<compile_context>
chip_gen: v7x
topology: tpu7x:2x2x1
jax: 0.10.0
libtpu: 0.0.40
codegen_flags: <defaults>
</compile_context>

<pallas_src>
import math
import jax
import jax.numpy as jnp
from jax.experimental import pallas as pl
from jax.experimental.pallas import tpu as pltpu


def _round_up(n, m):
    return ((n + m - 1) // m) * m


def _ef_generator_kernel(x_ref, w1_ref, b1_ref, w2_ref, b2_ref, o_ref):
    # x: (TM, D_in) bf16, w1: (D_in, H) bf16, b1: (1, H) f32,
    # w2: (H, D_out) bf16, b2: (1, D_out) f32, o: (TM, D_out)
    x = x_ref[...]

    # fc1 + tanh: bf16 MXU matmul, f32 accumulate, f32 elementwise.
    h = jnp.dot(x, w1_ref[...], preferred_element_type=jnp.float32)
    h = jnp.tanh(h + b1_ref[...])

    # fc2 + tanh.
    y = jnp.dot(h.astype(w2_ref.dtype), w2_ref[...],
                preferred_element_type=jnp.float32)
    y = jnp.tanh(y + b2_ref[...])

    o_ref[...] = y.astype(o_ref.dtype)


def ef_generator_forward(x, w1, b1, w2, b2, *, tm=512):
    """Fused forward: tanh(tanh(x @ w1.T + b1) @ w2.T + b2).

    x:  (B, D_in)            activations
    w1: (H, D_in), b1: (H,)  nn.Linear fc1 params (PyTorch layout)
    w2: (D_out, H), b2: (D_out,)
    """
    B, D_in = x.shape
    H = w1.shape[0]
    D_out = w2.shape[0]
    out_dtype = x.dtype

    # --- parameter prep (once, outside the kernel; parameters are free) ------
    w1_t = jnp.asarray(w1.T, dtype=jnp.bfloat16)        # (D_in, H)
    w2_t = jnp.asarray(w2.T, dtype=jnp.bfloat16)        # (H, D_out)
    b1_2d = jnp.asarray(b1, dtype=jnp.float32).reshape(1, H)
    b2_2d = jnp.asarray(b2, dtype=jnp.float32).reshape(1, D_out)

    # --- batch tiling ---------------------------------------------------------
    tm_eff = _round_up(min(tm, _round_up(B, 8)), 8)
    b_pad = _round_up(B, tm_eff)
    n_tiles = b_pad // tm_eff

    x_bf16 = jnp.asarray(x, dtype=jnp.bfloat16)
    if b_pad != B:
        x_bf16 = jnp.pad(x_bf16, ((0, b_pad - B), (0, 0)))

    # --- VMEM budget: 2x double-buffered x/out tiles + resident params -------
    vmem_bytes = (
        2 * tm_eff * D_in * 2                      # x tiles (bf16)
        + 2 * tm_eff * D_out * out_dtype.itemsize  # out tiles
        + (D_in * H + H * D_out) * 2               # resident weights (bf16)
        + (H + D_out) * 4                          # biases (f32)
    )
    vmem_limit = min(64 * 1024 * 1024, max(8 * vmem_bytes, 4 * 1024 * 1024))

    cost = pl.CostEstimate(
        flops=2 * b_pad * (D_in * H + H * D_out),
        transcendentals=b_pad * (H + D_out),
        bytes_accessed=(x_bf16.size * 2 + b_pad * D_out * out_dtype.itemsize
                        + w1_t.size * 2 + w2_t.size * 2
                        + b1_2d.size * 4 + b2_2d.size * 4),
    )

    out = pl.pallas_call(
        _ef_generator_kernel,
        out_shape=jax.ShapeDtypeStruct((b_pad, D_out), out_dtype),
        grid=(n_tiles,),
        in_specs=[
            pl.BlockSpec((tm_eff, D_in), lambda i: (i, 0)),   # x tile (pipelined)
            pl.BlockSpec((D_in, H), lambda i: (0, 0)),        # w1 resident
            pl.BlockSpec((1, H), lambda i: (0, 0)),           # b1 resident
            pl.BlockSpec((H, D_out), lambda i: (0, 0)),       # w2 resident
            pl.BlockSpec((1, D_out), lambda i: (0, 0)),       # b2 resident
        ],
        out_specs=pl.BlockSpec((tm_eff, D_out), lambda i: (i, 0)),
        compiler_params=pltpu.CompilerParams(
            dimension_semantics=("parallel",),   # batch rows independent -> 2 TCs on v7x
            vmem_limit_bytes=int(vmem_limit),
        ),
        cost_estimate=cost,
    )(x_bf16, w1_t, b1_2d, w2_t, b2_2d)

    return out[:B] if b_pad != B else out


def init_linear_params(key, in_features, out_features):
    """Deterministic init mimicking nn.Linear.reset_parameters():
    weight, bias ~ U(-1/sqrt(fan_in), 1/sqrt(fan_in))."""
    kw, kb = jax.random.split(key)
    bound = 1.0 / math.sqrt(in_features)
    w = jax.random.uniform(kw, (out_features, in_features), jnp.float32,
                           minval=-bound, maxval=bound)
    b = jax.random.uniform(kb, (out_features,), jnp.float32,
                           minval=-bound, maxval=bound)
    return w, b


if __name__ == "__main__":
    # Small shapes consistent with the module: input_dim=16, hidden_dim=32,
    # output_dim=8.  batch=50 with tm=32 exercises both the batch grid (2
    # steps) and the padding/slice path.
    batch, input_dim, hidden_dim, output_dim = 50, 16, 32, 8

    key = jax.random.PRNGKey(0)
    k_x, k_fc1, k_fc2 = jax.random.split(key, 3)

    x = jax.random.normal(k_x, (batch, input_dim), jnp.float32)
    w1, b1 = init_linear_params(k_fc1, input_dim, hidden_dim)
    w2, b2 = init_linear_params(k_fc2, hidden_dim, output_dim)

    out = ef_generator_forward(x, w1, b1, w2, b2, tm=32)
    out = jax.block_until_ready(out)

    # Pure-JAX f32 reference of the fused forward (kernel uses bf16 MXU
    # operands with f32 accumulation -> loosened tolerance).
    ref = jnp.tanh(jnp.tanh(x @ w1.T + b1) @ w2.T + b2)
    assert out.shape == (batch, output_dim)
    assert jnp.allclose(out, ref, atol=3e-2, rtol=3e-2), (
        float(jnp.max(jnp.abs(out - ref))))

    print("KERNEL_OK")
</pallas_src>

<mosaic_0001>
module attributes {stable_mosaic.version = 11 : i64} {
  func.func @_ef_generator_kernel(%arg0: i32, %arg1: memref<32x16xbf16, #tpu.memory_space<vmem>>, %arg2: memref<16x32xbf16, #tpu.memory_space<vmem>>, %arg3: memref<1x32xf32, #tpu.memory_space<vmem>>, %arg4: memref<32x8xbf16, #tpu.memory_space<vmem>>, %arg5: memref<1x8xf32, #tpu.memory_space<vmem>>, %arg6: memref<32x8xf32, #tpu.memory_space<vmem>>) attributes {dimension_semantics = [#tpu.dimension_semantics<parallel>], iteration_bounds = array<i64: 2>, scalar_prefetch = 0 : i64, scratch_operands = 0 : i64, tpu.core_type = #tpu.core_type<tc>, window_params = [{transform_indices = @transform_0, window_bounds = array<i64: 32, 16>}, {pipeline_mode = #tpu.pipeline_mode<synchronous>, transform_indices = @transform_1, window_bounds = array<i64: 16, 32>}, {pipeline_mode = #tpu.pipeline_mode<synchronous>, transform_indices = @transform_2, window_bounds = array<i64: 1, 32>}, {pipeline_mode = #tpu.pipeline_mode<synchronous>, transform_indices = @transform_3, window_bounds = array<i64: 32, 8>}, {pipeline_mode = #tpu.pipeline_mode<synchronous>, transform_indices = @transform_4, window_bounds = array<i64: 1, 8>}, {transform_indices = @transform_5, window_bounds = array<i64: 32, 8>}]} {
    %c0 = arith.constant 0 : index
    %c0_0 = arith.constant 0 : index
    %0 = vector.load %arg1[%c0, %c0_0] : memref<32x16xbf16, #tpu.memory_space<vmem>>, vector<32x16xbf16>
    %c0_1 = arith.constant 0 : index
    %c0_2 = arith.constant 0 : index
    %1 = vector.load %arg2[%c0_1, %c0_2] : memref<16x32xbf16, #tpu.memory_space<vmem>>, vector<16x32xbf16>
    %cst = arith.constant dense<0.000000e+00> : vector<32x32xf32>
    %2 = tpu.matmul %0, %1, %cst {dimension_numbers = #tpu.dot_dimension_numbers<[1], [0], [0], [1], [0, 0, 1, 1], [], []>} : vector<32x16xbf16>, vector<16x32xbf16>, vector<32x32xf32> -> vector<32x32xf32>
    %c0_3 = arith.constant 0 : index
    %c0_4 = arith.constant 0 : index
    %3 = vector.load %arg3[%c0_3, %c0_4] : memref<1x32xf32, #tpu.memory_space<vmem>>, vector<1x32xf32>
    %4 = vector.broadcast %3 : vector<1x32xf32> to vector<32x32xf32>
    %5 = arith.addf %2, %4 : vector<32x32xf32>
    %6 = math.tanh %5 : vector<32x32xf32>
    %7 = arith.truncf %6 : vector<32x32xf32> to vector<32x32xbf16>
    %c0_5 = arith.constant 0 : index
    %c0_6 = arith.constant 0 : index
    %8 = vector.load %arg4[%c0_5, %c0_6] : memref<32x8xbf16, #tpu.memory_space<vmem>>, vector<32x8xbf16>
    %cst_7 = arith.constant dense<0.000000e+00> : vector<32x8xf32>
    %9 = tpu.matmul %7, %8, %cst_7 {dimension_numbers = #tpu.dot_dimension_numbers<[1], [0], [0], [1], [0, 0, 1, 1], [], []>} : vector<32x32xbf16>, vector<32x8xbf16>, vector<32x8xf32> -> vector<32x8xf32>
    %c0_8 = arith.constant 0 : index
    %c0_9 = arith.constant 0 : index
    %10 = vector.load %arg5[%c0_8, %c0_9] : memref<1x8xf32, #tpu.memory_space<vmem>>, vector<1x8xf32>
    %11 = vector.broadcast %10 : vector<1x8xf32> to vector<32x8xf32>
    %12 = arith.addf %9, %11 : vector<32x8xf32>
    %13 = math.tanh %12 : vector<32x8xf32>
    %c0_10 = arith.constant 0 : index
    %c0_11 = arith.constant 0 : index
    %14 = vector.load %arg6[%c0_10, %c0_11] : memref<32x8xf32, #tpu.memory_space<vmem>>, vector<32x8xf32>
    tpu.vector_store %arg6[%c0_10, %c0_11], %13 {strides = array<i32>} : memref<32x8xf32, #tpu.memory_space<vmem>>, vector<32x8xf32>,
    return
  }
  func.func @transform_0(%arg0: i32) -> (i32, i32) {
    %c0_i32 = arith.constant 0 : i32
    %c0_i32_0 = arith.constant 0 : i32
    return %arg0, %c0_i32 : i32, i32
  }
  func.func @transform_1(%arg0: i32) -> (i32, i32) {
    %c0_i32 = arith.constant 0 : i32
    %c0_i32_0 = arith.constant 0 : i32
    %c0_i32_1 = arith.constant 0 : i32
    return %c0_i32, %c0_i32_0 : i32, i32
  }
  func.func @transform_2(%arg0: i32) -> (i32, i32) {
    %c0_i32 = arith.constant 0 : i32
    %c0_i32_0 = arith.constant 0 : i32
    %c0_i32_1 = arith.constant 0 : i32
    return %c0_i32, %c0_i32_0 : i32, i32
  }
  func.func @transform_3(%arg0: i32) -> (i32, i32) {
    %c0_i32 = arith.constant 0 : i32
    %c0_i32_0 = arith.constant 0 : i32
    %c0_i32_1 = arith.constant 0 : i32
    return %c0_i32, %c0_i32_0 : i32, i32
  }
  func.func @transform_4(%arg0: i32) -> (i32, i32) {
    %c0_i32 = arith.constant 0 : i32
    %c0_i32_0 = arith.constant 0 : i32
    %c0_i32_1 = arith.constant 0 : i32
    return %c0_i32, %c0_i32_0 : i32, i32
  }
  func.func @transform_5(%arg0: i32) -> (i32, i32) {
    %c0_i32 = arith.constant 0 : i32
    %c0_i32_0 = arith.constant 0 : i32
    return %arg0, %c0_i32 : i32, i32
  }
}

</mosaic_0001>

<llo_original>
// kernel: tpu_custom_call.1
$region0: #{tpu_custom_call.1}
  #allocation0 [shape = 'u32[]', space=smem, size = 0x4, offset = 0x4, fixed_abs, tag = 'smem constant byte address 0x4 - core index']
  #allocation1 [shape = 'u32[144,128]{1,0:T(1,128)}', space=vmem, size = 0x12000, scoped, tag = 'internal scratch']
  %s0 = inlined_call_operand.vmem [shape: bf16[64,16], index: 0, kind: input, shape index: {}]
  %s1 = inlined_call_operand.vmem [shape: bf16[16,32], index: 1, kind: input, shape index: {}]
  %s2 = inlined_call_operand.vmem [shape: f32[1,32], index: 2, kind: input, shape index: {}]
  %s3 = inlined_call_operand.vmem [shape: bf16[32,8], index: 3, kind: input, shape index: {}]
  %s4 = inlined_call_operand.vmem [shape: f32[1,8], index: 4, kind: input, shape index: {}]
  %s5 = inlined_call_operand.vmem [shape: f32[64,8], index: 5, kind: output, shape index: {}]
  %s6 = sld [smem:[#allocation0]]
  $region53: #{tpu_custom_call.1} parent=0
    _
  %s8 = ssub.s32 1, %s6
  %s9 = scalar_select 0, %s8, %s6
  loop: start=0, step=1, limit=4
  $region2: #{tpu_custom_call.1} parent=0 // loop_pre_header
    _
  $region3: #{tpu_custom_call.1} parent=0 // loop_header
    %s11 = sphi 0, %s15
    %p12 = scmp.ge.s32.totalorder %s11, 4
    %s21 = sphi 0, %s23
    %s24 = sphi 0, %s21
    %s25 = sphi 0, %s24
    %s41 = sphi 0, %s25
    %s45 = sphi 0, %s45
    %s47 = sphi 0, %s45
    %s48 = sphi 0, %s47
    %s62 = sphi 0, %s48
    %s66 = sphi 0, %s66
    %s68 = sphi 0, %s66
    %s69 = sphi 0, %s68
    %s83 = sphi 0, %s69
    %s87 = sphi 0, %s87
    %s89 = sphi 0, %s87
    %s90 = sphi 0, %s89
    %s104 = sphi 0, %s90
    %s108 = sphi 0, %s108
    %s110 = sphi 0, %s108
    %s111 = sphi 0, %s110
    %s125 = sphi 0, %s111
    %s131 = sphi 0, %s133
    %s134 = sphi 0, %s131
    %s135 = sphi 0, %s134
    %s151 = sphi 0, %s135
  $region4: #{tpu_custom_call.1} parent=0 // loop_header_branch
    %14 = sbr.rel (%p12) target = $region8
  $region5: #{tpu_custom_call.1} parent=0 // loop_body
    %s16 = ssub.s32 %s11, 1
    %s17 = ssub.s32 %s11, 2
    %s18 = sadd.s32 %s11, 1
    %s19 = ssub.s32 %s11, %s18
    %p20 = scmp.eq.s32.totalorder %s19, 0
    %s22 = sadd.s32 %s21, 1
    %s23 = scalar_select %p20, %s21, %s22
    %p26 = pneg %p20
    %p27 = scmp.eq.s32.totalorder %s11, 1
    %p28 = por %p26, %p27
    %p29 = scmp.ne.s32.totalorder %s21, %s24
    %p30 = scmp.eq.s32.totalorder %s11, 0
    %p31 = por %p29, %p30
    %p32 = scmp.ne.s32.totalorder %s21, %s24
    %p33 = scmp.eq.s32.totalorder %s16, 1
    %p34 = por %p32, %p33
    %p35 = scmp.ne.s32.totalorder %s24, %s25
    %p36 = scmp.eq.s32.totalorder %s16, 0
    %p37 = por %p35, %p36
    %p38 = scmp.ne.s32.totalorder %s24, %s25
    %p39 = scmp.eq.s32.totalorder %s17, 1
    %p40 = por %p38, %p39
    %p42 = scmp.ne.s32.totalorder %s25, %s41
    %p43 = scmp.eq.s32.totalorder %s17, 0
    %p44 = por %p42, %p43
    %s46 = sadd.s32 %s45, 1
    %p49 = scmp.eq.s32.totalorder %s11, 1
    %p50 = scmp.ne.s32.totalorder %s45, %s47
    %p51 = scmp.eq.s32.totalorder %s11, 0
    %p52 = por %p50, %p51
    %p53 = scmp.ne.s32.totalorder %s45, %s47
    %p54 = scmp.eq.s32.totalorder %s16, 1
    %p55 = por %p53, %p54
    %p56 = scmp.ne.s32.totalorder %s47, %s48
    %p57 = scmp.eq.s32.totalorder %s16, 0
    %p58 = por %p56, %p57
    %p59 = scmp.ne.s32.totalorder %s47, %s48
    %p60 = scmp.eq.s32.totalorder %s17, 1
    %p61 = por %p59, %p60
    %p63 = scmp.ne.s32.totalorder %s48, %s62
    %p64 = scmp.eq.s32.totalorder %s17, 0
    %p65 = por %p63, %p64
    %s67 = sadd.s32 %s66, 1
    %p70 = scmp.eq.s32.totalorder %s11, 1
    %p71 = scmp.ne.s32.totalorder %s66, %s68
    %p72 = scmp.eq.s32.totalorder %s11, 0
    %p73 = por %p71, %p72
    %p74 = scmp.ne.s32.totalorder %s66, %s68
    %p75 = scmp.eq.s32.totalorder %s16, 1
    %p76 = por %p74, %p75
    %p77 = scmp.ne.s32.totalorder %s68, %s69
    %p78 = scmp.eq.s32.totalorder %s16, 0
    %p79 = por %p77, %p78
    %p80 = scmp.ne.s32.totalorder %s68, %s69
    %p81 = scmp.eq.s32.totalorder %s17, 1
    %p82 = por %p80, %p81
    %p84 = scmp.ne.s32.totalorder %s69, %s83
    %p85 = scmp.eq.s32.totalorder %s17, 0
    %p86 = por %p84, %p85
    %s88 = sadd.s32 %s87, 1
    %p91 = scmp.eq.s32.totalorder %s11, 1
    %p92 = scmp.ne.s32.totalorder %s87, %s89
    %p93 = scmp.eq.s32.totalorder %s11, 0
    %p94 = por %p92, %p93
    %p95 = scmp.ne.s32.totalorder %s87, %s89
    %p96 = scmp.eq.s32.totalorder %s16, 1
    %p97 = por %p95, %p96
    %p98 = scmp.ne.s32.totalorder %s89, %s90
    %p99 = scmp.eq.s32.totalorder %s16, 0
    %p100 = por %p98, %p99
    %p101 = scmp.ne.s32.totalorder %s89, %s90
    %p102 = scmp.eq.s32.totalorder %s17, 1
    %p103 = por %p101, %p102
    %p105 = scmp.ne.s32.totalorder %s90, %s104
    %p106 = scmp.eq.s32.totalorder %s17, 0
    %p107 = por %p105, %p106
    %s109 = sadd.s32 %s108, 1
    %p112 = scmp.eq.s32.totalorder %s11, 1
    %p113 = scmp.ne.s32.totalorder %s108, %s110
    %p114 = scmp.eq.s32.totalorder %s11, 0
    %p115 = por %p113, %p114
    %p116 = scmp.ne.s32.totalorder %s108, %s110
    %p117 = scmp.eq.s32.totalorder %s16, 1
    %p118 = por %p116, %p117
    %p119 = scmp.ne.s32.totalorder %s110, %s111
    %p120 = scmp.eq.s32.totalorder %s16, 0
    %p121 = por %p119, %p120
    %p122 = scmp.ne.s32.totalorder %s110, %s111
    %p123 = scmp.eq.s32.totalorder %s17, 1
    %p124 = por %p122, %p123
    %p126 = scmp.ne.s32.totalorder %s111, %s125
    %p127 = scmp.eq.s32.totalorder %s17, 0
    %p128 = por %p126, %p127
    %s129 = ssub.s32 %s11, %s18
    %p130 = scmp.eq.s32.totalorder %s129, 0
    %s132 = sadd.s32 %s131, 1
    %s133 = scalar_select %p130, %s131, %s132
    %p136 = pneg %p130
    %p137 = scmp.eq.s32.totalorder %s11, 1
    %p138 = por %p136, %p137
    %p139 = scmp.ne.s32.totalorder %s131, %s134
    %p140 = scmp.eq.s32.totalorder %s11, 0
    %p141 = por %p139, %p140
    %p142 = scmp.ne.s32.totalorder %s131, %s134
    %p143 = scmp.eq.s32.totalorder %s16, 1
    %p144 = por %p142, %p143
    %p145 = scmp.ne.s32.totalorder %s134, %s135
    %p146 = scmp.eq.s32.totalorder %s16, 0
    %p147 = por %p145, %p146
    %p148 = scmp.ne.s32.totalorder %s134, %s135
    %p149 = scmp.eq.s32.totalorder %s17, 1
    %p150 = por %p148, %p149
    %p152 = scmp.ne.s32.totalorder %s135, %s151
    %p153 = scmp.eq.s32.totalorder %s17, 0
    %p154 = por %p152, %p153
    %p155 = scmp.le.s32.totalorder 1, %s11
    %p156 = scmp.lt.s32.totalorder %s11, 3
    %p157 = pnand %p155, %p156
    %p158 = pneg %p157
    // Predicated region
    $region9: #{tpu_custom_call.1} parent=5 // pred_check
      _
    $region10: #{tpu_custom_call.1} parent=5 // pred_check_branch
      %160 = sbr.rel (%p157) target = $region12
    $region11: #{tpu_custom_call.1} parent=5 // pred_region
      %s161 = ssub.s32 %s11, 1
      // Predicated region
      $region13: #{tpu_custom_call.1} parent=11 // pred_check
        %p162 = pneg %p58
      $region14: #{tpu_custom_call.1} parent=11 // pred_check_branch
        %164 = sbr.rel (%p162) target = $region16
      $region15: #{tpu_custom_call.1} parent=11 // pred_region
        _
      $region16: #{tpu_custom_call.1} parent=11 // pred_fallthru
        _
      // Predicated region
      $region17: #{tpu_custom_call.1} parent=11 // pred_check
        %p165 = pneg %p79
      $region18: #{tpu_custom_call.1} parent=11 // pred_check_branch
        %167 = sbr.rel (%p165) target = $region20
      $region19: #{tpu_custom_call.1} parent=11 // pred_region
        _
      $region20: #{tpu_custom_call.1} parent=11 // pred_fallthru
        _
      // Predicated region
      $region21: #{tpu_custom_call.1} parent=11 // pred_check
        %p168 = pneg %p100
      $region22: #{tpu_custom_call.1} parent=11 // pred_check_branch
        %170 = sbr.rel (%p168) target = $region24
      $region23: #{tpu_custom_call.1} parent=11 // pred_region
        _
      $region24: #{tpu_custom_call.1} parent=11 // pred_fallthru
        _
      // Predicated region
      $region25: #{tpu_custom_call.1} parent=11 // pred_check
        %p171 = pneg %p121
      $region26: #{tpu_custom_call.1} parent=11 // pred_check_branch
        %173 = sbr.rel (%p171) target = $region28
      $region27: #{tpu_custom_call.1} parent=11 // pred_region
        _
      $region28: #{tpu_custom_call.1} parent=11 // pred_fallthru
        _
    $region12: #{tpu_custom_call.1} parent=5 // pred_fallthru
      _
    %p174 = scmp.lt.s32.totalorder %s11, 2
    // Predicated region
    $region29: #{tpu_custom_call.1} parent=5 // pred_check
      %p175 = pneg %p174
    $region30: #{tpu_custom_call.1} parent=5 // pred_check_branch
      %177 = sbr.rel (%p175) target = $region32
    $region31: #{tpu_custom_call.1} parent=5 // pred_region
      // Predicated region
      $region33: #{tpu_custom_call.1} parent=31 // pred_check
        %p178 = pneg %p31
      $region34: #{tpu_custom_call.1} parent=31 // pred_check_branch
        %180 = sbr.rel (%p178) target = $region36
      $region35: #{tpu_custom_call.1} parent=31 // pred_region
        %s181 = smul.u32 4, %s11
        %p182 = scmp.lt.s32.totalorder %s181, 7
        %s183 = scalar_select %p182, %s181, 7
        %s184 = smul.addr %s183, 4
        %s185 = scalar_lea.vmem %s0, %s184
        %s186 = smul.u32 4, %s11
      $region36: #{tpu_custom_call.1} parent=31 // pred_fallthru
        _
    $region32: #{tpu_custom_call.1} parent=5 // pred_fallthru
      _
    %p187 = scmp.le.s32.totalorder 1, %s11
    %p188 = scmp.lt.s32.totalorder %s11, 3
    %p189 = pnand %p187, %p188
    %p190 = pneg %p189
    // Predicated region
    $region37: #{tpu_custom_call.1} parent=5 // pred_check
      _
    $region38: #{tpu_custom_call.1} parent=5 // pred_check_branch
      %192 = sbr.rel (%p189) target = $region40
    $region39: #{tpu_custom_call.1} parent=5 // pred_region
      %s193 = ssub.s32 %s11, 1
      %s194 = smul.u32 4, %s16
      %p195 = scmp.lt.s32.totalorder %s194, 7
      %s196 = scalar_select %p195, %s194, 7
      %s197 = smul.addr %s196, 4
      %s198 = scalar_lea.vmem %s0, %s197
      %p199 = pneg %p37
      %p200 = pneg %p34
      %p201 = pneg %p58
      %p202 = pneg %p55
      %p203 = pneg %p79
      %p204 = pneg %p76
      %p205 = pneg %p100
      %p206 = pneg %p97
      %p207 = pneg %p121
      %p208 = pneg %p118
      %p209 = pneg %p147
      %p210 = pneg %p144
      %s211 = smul.u32 4, %s16
      %p212 = scmp.lt.s32.totalorder %s211, 7
      %s213 = scalar_select %p212, %s211, 7
      %s214 = smul.addr %s213, 8
      %s215 = scalar_lea.vmem %s5, %s214
      %s216 = smul.u32 4, %s16
      %p217 = scmp.lt.s32.totalorder %s216, 7
      %s218 = scalar_select %p217, %s216, 7
      %s219 = smul.addr %s218, 4
      %s220 = scalar_lea.vmem %s0, %s219
      %s221 = smul.u32 4, %s16
      %s222 = smul.u32 4, %s16
      %p223 = scmp.lt.s32.totalorder %s222, 7
      %s224 = scalar_select %p223, %s222, 7
      %s225 = smul.addr %s224, 8
      %s226 = scalar_lea.vmem %s5, %s225
      %s227 = smul.u32 4, %s16
      %v229 = vld [vmem:[%s220] sm:$0xf]
      %v230 = vld [vmem:[%s220 + $0x4] sm:$0xf]
      %v231 = vld [vmem:[%s220 + $0x8] sm:$0xf]
      %v232 = vld [vmem:[%s220 + $0xc] sm:$0xf]
      %v233 = vld [vmem:[%s1] sm:$0xf]
      %v234 = vld [vmem:[%s1 + $0x4] sm:$0xf]
      %v235 = vld [vmem:[%s2] sm:$0x1]
      %v237 = vlaneseq
      %v238 = vshrl.u32 %v237, 7
      %v239 = vsub.s32 0, %v238
      %v240 = vrot.slane %v235, %v239
      %v246 = vunpack.c.l.b16 %v229
      %v247 = vunpack.c.l.b16 %v230
      %v248 = vunpack.c.l.b16 %v231
      %v249 = vunpack.c.l.b16 %v232
      %v250 = vpack.c.b16 %v247, %v246
      %v251 = vpack.c.b16 %v249, %v248
      %v254 = vunpack.c.l.b16 %v233
      %v255 = vunpack.c.l.b16 %v234
      %v256 = vpack.c.b16 %v255, %v254
      %vm258 = vcmask 130048
      %v260 = vsel %vm258, %v250, 0
      %v263 = vsel %vm258, %v251, 0
      %265 = vmatprep.subr.bf16.mxu0 0
      %266 = vmatpush1.bf16.msra.mxu0 %v256
      %267 = vmatprep.subr.bf16.mxu0 0
      %268 = vmatpush1.bf16.msra.mxu0 0
      %269 = vmatprep.subr.bf16.mxu0 0
      %270 = vmatpush1.bf16.msra.mxu0 0
      %271 = vmatprep.subr.bf16.mxu0 0
      %272 = vmatpush1.bf16.msra.mxu0 0
      %273 = vmatprep.subr.bf16.mxu0 0
      %274 = vmatpush1.bf16.msra.mxu0 0
      %275 = vmatprep.subr.bf16.mxu0 0
      %276 = vmatpush1.bf16.msra.mxu0 0
      %277 = vmatprep.subr.bf16.mxu0 0
      %278 = vmatpush1.bf16.msra.mxu0 0
      %279 = vmatprep.subr.bf16.mxu0 0
      %280 = vmatpush1.bf16.msra.mxu0 0
      %281 = vmatprep.subr.bf16.mxu0 0
      %282 = vmatpush1.bf16.msra.mxu0 0
      %283 = vmatprep.subr.bf16.mxu0 0
      %284 = vmatpush1.bf16.msra.mxu0 0
      %285 = vmatprep.subr.bf16.mxu0 0
      %286 = vmatpush1.bf16.msra.mxu0 0
      %287 = vmatprep.subr.bf16.mxu0 0
      %288 = vmatpush1.bf16.msra.mxu0 0
      %289 = vmatprep.subr.bf16.mxu0 0
      %290 = vmatpush1.bf16.msra.mxu0 0
      %291 = vmatprep.subr.bf16.mxu0 0
      %292 = vmatpush1.bf16.msra.mxu0 0
      %293 = vmatprep.subr.bf16.mxu0 0
      %294 = vmatpush1.bf16.msra.mxu0 0
      %295 = vmatprep.subr.bf16.mxu0 0
      %296 = vmatpush1.bf16.msra.mxu0 0
      %297 = vmatprep.mubr.bf16.mxu0 0
      %298 = vmatmul.mubr.bf16.gmra.mrb[0].mxu0 %v260
      %v299 = vpop.f32.mrb[0].mxu0
      %v300 = vadd.f32 %v240, %v299
      %v301 = vpop.f32.mrb[0].mxu0
      %v302 = vpop.f32.mrb[0].mxu0
      %v303 = vadd.f32 %v240, %v302
      %v304 = vpop.f32.mrb[0].mxu0
      %305 = vmatprep.mubr.bf16.mxu0 0
      %306 = vmatmul.mubr.bf16.gmra.mrb[0].mxu0 %v263
      %v307 = vpop.f32.mrb[0].mxu0
      %v308 = vadd.f32 %v240, %v307
      %v309 = vpop.f32.mrb[0].mxu0
      %v310 = vpop.f32.mrb[0].mxu0
      %v311 = vadd.f32 %v240, %v310
      %v312 = vpop.f32.mrb[0].mxu0
      %313 = vdwg.mxu0
      %v314 = vtanh.pop %v300
      %v315 = vtanh.pop %v303
      %v316 = vtanh.pop %v308
      %v317 = vtanh.pop %v311
      %v318 = vpack.c.bf16 %v315, %v314
      %v319 = vpack.c.bf16 %v317, %v316
      %v320 = vld [vmem:[%s3] sm:$0xf]
      %v321 = vld [vmem:[%s3 + $0x4] sm:$0xf]
      %v322 = vld [vmem:[%s3 + $0x8] sm:$0xf]
      %v323 = vld [vmem:[%s3 + $0xc] sm:$0xf]
      %v324 = vld [vmem:[%s4] sm:$0x1]
      %v326 = vlaneseq
      %v327 = vshrl.u32 %v326, 7
      %v328 = vsub.s32 0, %v327
      %v329 = vrot.slane %v324, %v328
      %v335 = vunpack.c.l.b16 %v320
      %v336 = vunpack.c.l.b16 %v321
      %v337 = vunpack.c.l.b16 %v322
      %v338 = vunpack.c.l.b16 %v323
      %v339 = vpack.c.b16 %v336, %v335
      %v340 = vpack.c.b16 %v338, %v337
      %vm343 = vcmask 261120
      %v345 = vsel %vm343, %v318, 0
      %v348 = vsel %vm343, %v319, 0
      %350 = vmatprep.subr.bf16.mxu0 0
      %351 = vmatpush1.bf16.msra.mxu0 %v339
      %352 = vmatprep.subr.bf16.mxu0 0
      %353 = vmatpush1.bf16.msra.mxu0 %v340
      %354 = vmatprep.subr.bf16.mxu0 0
      %355 = vmatpush1.bf16.msra.mxu0 0
      %356 = vmatprep.subr.bf16.mxu0 0
      %357 = vmatpush1.bf16.msra.mxu0 0
      %358 = vmatprep.subr.bf16.mxu0 0
      %359 = vmatpush1.bf16.msra.mxu0 0
      %360 = vmatprep.subr.bf16.mxu0 0
      %361 = vmatpush1.bf16.msra.mxu0 0
      %362 = vmatprep.subr.bf16.mxu0 0
      %363 = vmatpush1.bf16.msra.mxu0 0
      %364 = vmatprep.subr.bf16.mxu0 0
      %365 = vmatpush1.bf16.msra.mxu0 0
      %366 = vmatprep.subr.bf16.mxu0 0
      %367 = vmatpush1.bf16.msra.mxu0 0
      %368 = vmatprep.subr.bf16.mxu0 0
      %369 = vmatpush1.bf16.msra.mxu0 0
      %370 = vmatprep.subr.bf16.mxu0 0
      %371 = vmatpush1.bf16.msra.mxu0 0
      %372 = vmatprep.subr.bf16.mxu0 0
      %373 = vmatpush1.bf16.msra.mxu0 0
      %374 = vmatprep.subr.bf16.mxu0 0
      %375 = vmatpush1.bf16.msra.mxu0 0
      %376 = vmatprep.subr.bf16.mxu0 0
      %377 = vmatpush1.bf16.msra.mxu0 0
      %378 = vmatprep.subr.bf16.mxu0 0
      %379 = vmatpush1.bf16.msra.mxu0 0
      %380 = vmatprep.subr.bf16.mxu0 0
      %381 = vmatpush1.bf16.msra.mxu0 0
      %382 = vmatprep.mubr.bf16.mxu0 0
      %383 = vmatmul.mubr.bf16.gmra.mrb[0].mxu0 %v345
      %v384 = vpop.f32.mrb[0].mxu0
      %v385 = vadd.f32 %v329, %v384
      %v386 = vpop.f32.mrb[0].mxu0
      %v387 = vpop.f32.mrb[0].mxu0
      %v388 = vadd.f32 %v329, %v387
      %v389 = vpop.f32.mrb[0].mxu0
      %390 = vmatprep.mubr.bf16.mxu0 0
      %391 = vmatmul.mubr.bf16.gmra.mrb[0].mxu0 %v348
      %v392 = vpop.f32.mrb[0].mxu0
      %v393 = vadd.f32 %v329, %v392
      %v394 = vpop.f32.mrb[0].mxu0
      %v395 = vpop.f32.mrb[0].mxu0
      %v396 = vadd.f32 %v329, %v395
      %v397 = vpop.f32.mrb[0].mxu0
      %398 = vdwg.mxu0
      %v399 = vtanh.pop %v385
      %v400 = vtanh.pop %v388
      %v401 = vtanh.pop %v393
      %v402 = vtanh.pop %v396
      %vm403 = vcmask 64512
      %404 = vst.msk [vmem:[%s226] sm:$0xff] %vm403, %v399
      %405 = vst.msk [vmem:[%s226 + $0x8] sm:$0xff] %vm403, %v400
      %406 = vst.msk [vmem:[%s226 + $0x10] sm:$0xff] %vm403, %v401
      %407 = vst.msk [vmem:[%s226 + $0x18] sm:$0xff] %vm403, %v402
      %s408 = smul.u32 4, %s16
      %p409 = scmp.lt.s32.totalorder %s408, 7
      %s410 = scalar_select %p409, %s408, 7
      %s411 = smul.addr %s410, 8
      %s412 = scalar_lea.vmem %s5, %s411
      // Predicated region
      $region41: #{tpu_custom_call.1} parent=39 // pred_check
        %p413 = pneg %p144
      $region42: #{tpu_custom_call.1} parent=39 // pred_check_branch
        %415 = sbr.rel (%p413) target = $region44
      $region43: #{tpu_custom_call.1} parent=39 // pred_region
        %s416 = smul.u32 4, %s16
      $region44: #{tpu_custom_call.1} parent=39 // pred_fallthru
        _
    $region40: #{tpu_custom_call.1} parent=5 // pred_fallthru
      _
    %p417 = scmp.le.s32.totalorder 2, %s11
    // Predicated region
    $region45: #{tpu_custom_call.1} parent=5 // pred_check
      %p418 = pneg %p417
    $region46: #{tpu_custom_call.1} parent=5 // pred_check_branch
      %420 = sbr.rel (%p418) target = $region48
    $region47: #{tpu_custom_call.1} parent=5 // pred_region
      %s421 = ssub.s32 %s11, 2
      // Predicated region
      $region49: #{tpu_custom_call.1} parent=47 // pred_check
        %p422 = pneg %p150
      $region50: #{tpu_custom_call.1} parent=47 // pred_check_branch
        %424 = sbr.rel (%p422) target = $region52
      $region51: #{tpu_custom_call.1} parent=47 // pred_region
        %s425 = smul.u32 4, %s17
        %p426 = scmp.lt.s32.totalorder %s425, 7
        %s427 = scalar_select %p426, %s425, 7
        %s428 = smul.addr %s427, 8
        %s429 = scalar_lea.vmem %s5, %s428
      $region52: #{tpu_custom_call.1} parent=47 // pred_fallthru
        _
    $region48: #{tpu_custom_call.1} parent=5 // pred_fallthru
      _
  $region6: #{tpu_custom_call.1} parent=0 // loop_footer
    %s15 = sadd.s32 1, %s11
  $region7: #{tpu_custom_call.1} parent=0 // loop_footer_branch
    %10 = sbr.rel target = $region3
  $region8: #{tpu_custom_call.1} parent=0 // loop_exit
    _

</llo_original>
